<compile_context>
chip_gen: v7x
topology: tpu7x:2x2x1
jax: 0.10.0
libtpu: 0.0.40
codegen_flags: <defaults>
</compile_context>

<pallas_src>
import jax
import jax.numpy as jnp
from jax.experimental import pallas as pl
from jax.experimental.pallas import tpu as pltpu

INPUT_DIM = 2560        # matches the PyTorch module's input_dim
MAX_BATCH_TILE = 1024   # 10 MiB/tile; double-buffers in ~20 MiB of VMEM
VMEM_LIMIT_BYTES = 40 << 20  # safe headroom on v5e/v6e (128 MiB) and v7x (64 MiB)


def _round_up(n, m):
    return ((n + m - 1) // m) * m


def _linear_kernel(x_ref, w_ref, b_ref, o_ref):
    # x_ref: (TB, D) f32 activation tile in VMEM
    # w_ref: (1, D)  f32 resident weight row in VMEM
    # b_ref: (1, 1)  f32 scalar in SMEM
    # o_ref: (TB, 1) f32 output tile
    prod = x_ref[...] * w_ref[...]                  # VPU broadcast multiply
    acc = jnp.sum(prod, axis=-1, keepdims=True)     # VPU chunk adds + XLU lane reduce
    o_ref[...] = (acc + b_ref[0, 0]).astype(o_ref.dtype)


def dnn_linear_forward(x, weight, bias, *, block_batch=None):
    """x: (B, D) f32; weight: (1, D) f32 (PyTorch nn.Linear layout); bias: (1,) f32."""
    B, D = x.shape
    assert weight.shape == (1, D)

    if block_batch is None:
        # Clamp to the batch size (rounded up to a sublane multiple) so tiny
        # batches don't allocate an oversized tile.
        block_batch = min(MAX_BATCH_TILE, _round_up(B, 8))
    tb = int(block_batch)
    num_tiles = pl.cdiv(B, tb)

    b2d = bias.reshape(1, 1).astype(jnp.float32)

    cost = pl.CostEstimate(
        flops=2 * B * D,
        transcendentals=0,
        bytes_accessed=4 * (B * D + D + B + 1),
    )

    return pl.pallas_call(
        _linear_kernel,
        out_shape=jax.ShapeDtypeStruct((B, 1), x.dtype),
        grid_spec=pl.GridSpec(
            grid=(num_tiles,),
            in_specs=[
                # Streamed activation tile: one block row per grid step.
                pl.BlockSpec((tb, D), lambda i: (i, 0)),
                # Weight row stays resident across the whole grid.
                pl.BlockSpec((1, D), lambda i: (0, 0)),
                # Bias: whole (1, 1) array in SMEM (scalar path, no VMEM tile).
                pl.BlockSpec(memory_space=pltpu.MemorySpace.SMEM),
            ],
            out_specs=pl.BlockSpec((tb, 1), lambda i: (i, 0)),
        ),
        compiler_params=pltpu.CompilerParams(
            dimension_semantics=("parallel",),
            vmem_limit_bytes=VMEM_LIMIT_BYTES,
        ),
        cost_estimate=cost,
    )(x, weight, b2d)


def init_params(key, input_dim):
    """Deterministic parameter init mirroring the PyTorch module:
    - fc1.weight: xavier_uniform_ over shape (1, input_dim)
    - fc1.bias:   PyTorch nn.Linear default: U(-1/sqrt(fan_in), 1/sqrt(fan_in))
    """
    kw, kb = jax.random.split(key)
    fan_in, fan_out = input_dim, 1
    xavier_bound = jnp.sqrt(6.0 / (fan_in + fan_out))
    weight = jax.random.uniform(
        kw, (1, input_dim), minval=-xavier_bound, maxval=xavier_bound,
        dtype=jnp.float32)
    bias_bound = 1.0 / jnp.sqrt(jnp.float32(fan_in))
    bias = jax.random.uniform(
        kb, (1,), minval=-bias_bound, maxval=bias_bound, dtype=jnp.float32)
    return weight, bias


if __name__ == "__main__":
    key = jax.random.PRNGKey(0)
    k_params, k_x, k_x2 = jax.random.split(key, 3)

    weight, bias = init_params(k_params, INPUT_DIM)

    # Primary check: small batch consistent with the module's forward.
    batch = 8
    x = jax.random.normal(k_x, (batch, INPUT_DIM), dtype=jnp.float32)
    out = dnn_linear_forward(x, weight, bias)
    out = jax.block_until_ready(out)
    ref = x @ weight.T + bias
    assert out.shape == (batch, 1)
    assert jnp.allclose(out, ref, atol=1e-4, rtol=1e-4)

    # Secondary check: multi-tile grid with a partial last batch tile to
    # exercise the tiled / pipelined path and output masking.
    batch2 = 200
    x2 = jax.random.normal(k_x2, (batch2, INPUT_DIM), dtype=jnp.float32)
    out2 = dnn_linear_forward(x2, weight, bias, block_batch=128)
    out2 = jax.block_until_ready(out2)
    ref2 = x2 @ weight.T + bias
    assert out2.shape == (batch2, 1)
    assert jnp.allclose(out2, ref2, atol=1e-4, rtol=1e-4)

    print("KERNEL_OK")
</pallas_src>

<mosaic_0001>
module attributes {stable_mosaic.version = 11 : i64} {
  func.func @_linear_kernel(%arg0: i32, %arg1: memref<8x2560xf32, #tpu.memory_space<vmem>>, %arg2: memref<1x2560xf32, #tpu.memory_space<vmem>>, %arg3: memref<1x1xf32, #tpu.memory_space<smem>>, %arg4: memref<8x1xf32, #tpu.memory_space<vmem>>) attributes {dimension_semantics = [#tpu.dimension_semantics<parallel>], iteration_bounds = array<i64: 1>, scalar_prefetch = 0 : i64, scratch_operands = 0 : i64, tpu.core_type = #tpu.core_type<tc>, window_params = [{transform_indices = @transform_0, window_bounds = array<i64: 8, 2560>}, {pipeline_mode = #tpu.pipeline_mode<synchronous>, transform_indices = @transform_1, window_bounds = array<i64: 1, 2560>}, {transform_indices = @transform_2, window_bounds = array<i64: 1, 1>}, {transform_indices = @transform_3, window_bounds = array<i64: 8, 1>}]} {
    %c0 = arith.constant 0 : index
    %c0_0 = arith.constant 0 : index
    %0 = vector.load %arg1[%c0, %c0_0] : memref<8x2560xf32, #tpu.memory_space<vmem>>, vector<8x2560xf32>
    %c0_1 = arith.constant 0 : index
    %c0_2 = arith.constant 0 : index
    %1 = vector.load %arg2[%c0_1, %c0_2] : memref<1x2560xf32, #tpu.memory_space<vmem>>, vector<1x2560xf32>
    %2 = vector.broadcast %1 : vector<1x2560xf32> to vector<8x2560xf32>
    %3 = arith.mulf %0, %2 : vector<8x2560xf32>
    %cst = arith.constant dense<0.000000e+00> : vector<8xf32>
    %4 = vector.multi_reduction <add>, %3, %cst [1] : vector<8x2560xf32> to vector<8xf32>
    %5 = vector.shape_cast %4 : vector<8xf32> to vector<8x1xf32>
    %c0_3 = arith.constant 0 : index
    %c0_4 = arith.constant 0 : index
    %6 = memref.load %arg3[%c0_3, %c0_4] : memref<1x1xf32, #tpu.memory_space<smem>>
    %7 = vector.broadcast %6 : f32 to vector<8x1xf32>
    %8 = arith.addf %5, %7 : vector<8x1xf32>
    %c0_5 = arith.constant 0 : index
    %c0_6 = arith.constant 0 : index
    %9 = vector.load %arg4[%c0_5, %c0_6] : memref<8x1xf32, #tpu.memory_space<vmem>>, vector<8x1xf32>
    tpu.vector_store %arg4[%c0_5, %c0_6], %8 {strides = array<i32>} : memref<8x1xf32, #tpu.memory_space<vmem>>, vector<8x1xf32>,
    return
  }
  func.func @transform_0(%arg0: i32) -> (i32, i32) {
    %c0_i32 = arith.constant 0 : i32
    %c0_i32_0 = arith.constant 0 : i32
    return %arg0, %c0_i32 : i32, i32
  }
  func.func @transform_1(%arg0: i32) -> (i32, i32) {
    %c0_i32 = arith.constant 0 : i32
    %c0_i32_0 = arith.constant 0 : i32
    %c0_i32_1 = arith.constant 0 : i32
    return %c0_i32, %c0_i32_0 : i32, i32
  }
  func.func @transform_2(%arg0: i32) -> (i32, i32) {
    %c0_i32 = arith.constant 0 : i32
    %c0_i32_0 = arith.constant 0 : i32
    %c0_i32_1 = arith.constant 0 : i32
    return %c0_i32, %c0_i32_0 : i32, i32
  }
  func.func @transform_3(%arg0: i32) -> (i32, i32) {
    %c0_i32 = arith.constant 0 : i32
    %c0_i32_0 = arith.constant 0 : i32
    return %arg0, %c0_i32 : i32, i32
  }
}

</mosaic_0001>

<llo_original>
// kernel: tpu_custom_call.1
$region0: #{tpu_custom_call.1}
  #allocation0 [shape = 'u32[]', space=smem, size = 0x4, offset = 0x4, fixed_abs, tag = 'smem constant byte address 0x4 - core index']
  #allocation1 [shape = 'u32[144,128]{1,0:T(1,128)}', space=vmem, size = 0x12000, scoped, tag = 'internal scratch']
  #allocation2 [shape = 'f32[1,1]{1,0:T(1,128)S(6)}', space=smem, size = 0x200, scoped, tag = 'scoped memory for tpu_custom_call.1']
  %s0 = inlined_call_operand.hbm [shape: f32[8,2560], index: 0, kind: input, shape index: {}]
  %s1 = inlined_call_operand.hbm [shape: f32[1,2560], index: 1, kind: input, shape index: {}]
  %s2 = inlined_call_operand.<no memory space> [shape: f32[1,1], index: 2, kind: input, shape index: {}]
  %s3 = inlined_call_operand.vmem [shape: f32[8,1], index: 3, kind: output, shape index: {}]
  %s4 = sld [smem:[#allocation0]]
  $region30: #{tpu_custom_call.1} parent=0
    _
  %s6 = ssub.s32 1, %s4
  %s7 = scalar_select 0, %s6, %s4
  %8 = sst [smem:[#allocation2]] %s2
  $region1: #{tpu_custom_call.1} parent=0
    #allocation3 [shape = 'u8[81920]{0}', space=vmem, size = 0x14000, scoped, tag = 'input window, operand 0, single buffered']
    #allocation4 [shape = 's32[1]{0}', space=sflag, size = 0x4, scoped, tag = 'scoped memory for tpu_custom_call.1']
    #allocation5 [shape = 'u8[10240]{0}', space=vmem, size = 0x2800, scoped, tag = 'input window, operand 1, single buffered']
    #allocation6 [shape = 's32[1]{0}', space=sflag, size = 0x4, scoped, tag = 'scoped memory for tpu_custom_call.1']
    %9 = vsyncpa [#allocation4], 0
    %10 = vsyncpa [#allocation6], 0
    // Predicated region
    $region2: #{tpu_custom_call.1} parent=1 // pred_check
      _
    $region3: #{tpu_custom_call.1} parent=1 // pred_check_branch
      %12 = sbr.rel (0) target = $region5
    $region4: #{tpu_custom_call.1} parent=1 // pred_region
      %s14 = ssub.s32 2560, 2560
      %15 = vsyncadd [#allocation4], %s14
      %s17 = sshll.u32 [#allocation3], 4
      %s18 = int_to_ptr.vmem [resolvable:$true] %s17
      %20 = dma.hbm_to_vmem [thread:$0]  %s0, 2560, %s18, [#allocation4]
    $region5: #{tpu_custom_call.1} parent=1 // pred_fallthru
      _
    // Predicated region
    $region6: #{tpu_custom_call.1} parent=1 // pred_check
      _
    $region7: #{tpu_custom_call.1} parent=1 // pred_check_branch
      %22 = sbr.rel (0) target = $region9
    $region8: #{tpu_custom_call.1} parent=1 // pred_region
      %s24 = ssub.s32 320, 320
      %25 = vsyncadd [#allocation6], %s24
      %s27 = sshll.u32 [#allocation5], 4
      %s28 = int_to_ptr.vmem [resolvable:$true] %s27
      %30 = dma.hbm_to_vmem [thread:$0]  %s1, 320, %s28, [#allocation6]
    $region9: #{tpu_custom_call.1} parent=1 // pred_fallthru
      _
    // Predicated region
    $region10: #{tpu_custom_call.1} parent=1 // pred_check
      _
    $region11: #{tpu_custom_call.1} parent=1 // pred_check_branch
      %32 = sbr.rel (0) target = $region13
    $region12: #{tpu_custom_call.1} parent=1 // pred_region
      _
    $region13: #{tpu_custom_call.1} parent=1 // pred_fallthru
      _
    // Predicated region
    $region14: #{tpu_custom_call.1} parent=1 // pred_check
      _
    $region15: #{tpu_custom_call.1} parent=1 // pred_check_branch
      %34 = sbr.rel (0) target = $region17
    $region16: #{tpu_custom_call.1} parent=1 // pred_region
      %35 = dma.done [#allocation4], 2560
    $region17: #{tpu_custom_call.1} parent=1 // pred_fallthru
      _
    // Predicated region
    $region18: #{tpu_custom_call.1} parent=1 // pred_check
      _
    $region19: #{tpu_custom_call.1} parent=1 // pred_check_branch
      %37 = sbr.rel (0) target = $region21
    $region20: #{tpu_custom_call.1} parent=1 // pred_region
      %38 = dma.done [#allocation6], 320
    $region21: #{tpu_custom_call.1} parent=1 // pred_fallthru
      _
    %v39 = vld [vmem:[#allocation3] sm:$0xff]
    %v40 = vld [vmem:[#allocation3 + $0x8] sm:$0xff]
    %v41 = vld [vmem:[#allocation3 + $0x10] sm:$0xff]
    %v42 = vld [vmem:[#allocation3 + $0x18] sm:$0xff]
    %v43 = vld [vmem:[#allocation3 + $0x20] sm:$0xff]
    %v44 = vld [vmem:[#allocation3 + $0x28] sm:$0xff]
    %v45 = vld [vmem:[#allocation3 + $0x30] sm:$0xff]
    %v46 = vld [vmem:[#allocation3 + $0x38] sm:$0xff]
    %v47 = vld [vmem:[#allocation3 + $0x40] sm:$0xff]
    %v48 = vld [vmem:[#allocation3 + $0x48] sm:$0xff]
    %v49 = vld [vmem:[#allocation3 + $0x50] sm:$0xff]
    %v50 = vld [vmem:[#allocation3 + $0x58] sm:$0xff]
    %v51 = vld [vmem:[#allocation3 + $0x60] sm:$0xff]
    %v52 = vld [vmem:[#allocation3 + $0x68] sm:$0xff]
    %v53 = vld [vmem:[#allocation3 + $0x70] sm:$0xff]
    %v54 = vld [vmem:[#allocation3 + $0x78] sm:$0xff]
    %v55 = vld [vmem:[#allocation3 + $0x80] sm:$0xff]
    %v56 = vld [vmem:[#allocation3 + $0x88] sm:$0xff]
    %v57 = vld [vmem:[#allocation3 + $0x90] sm:$0xff]
    %v58 = vld [vmem:[#allocation3 + $0x98] sm:$0xff]
    %v59 = vld [vmem:[#allocation5] sm:$0xff]
    %v60 = vld [vmem:[#allocation5 + $0x8] sm:$0xff]
    %v61 = vld [vmem:[#allocation5 + $0x10] sm:$0xf]
    %v65 = vlaneseq
    %v66 = vshrl.u32 %v65, 7
    %v67 = vsub.s32 0, %v66
    %v68 = vrot.slane %v59, %v67
    %v69 = vlaneseq
    %v70 = vshrl.u32 %v69, 7
    %v71 = vsub.s32 1, %v70
    %v72 = vrot.slane %v59, %v71
    %v73 = vlaneseq
    %v74 = vshrl.u32 %v73, 7
    %v75 = vsub.s32 2, %v74
    %v76 = vrot.slane %v59, %v75
    %v77 = vlaneseq
    %v78 = vshrl.u32 %v77, 7
    %v79 = vsub.s32 3, %v78
    %v80 = vrot.slane %v59, %v79
    %v81 = vlaneseq
    %v82 = vshrl.u32 %v81, 7
    %v83 = vsub.s32 4, %v82
    %v84 = vrot.slane %v59, %v83
    %v85 = vlaneseq
    %v86 = vshrl.u32 %v85, 7
    %v87 = vsub.s32 5, %v86
    %v88 = vrot.slane %v59, %v87
    %v89 = vlaneseq
    %v90 = vshrl.u32 %v89, 7
    %v91 = vsub.s32 6, %v90
    %v92 = vrot.slane %v59, %v91
    %v93 = vlaneseq
    %v94 = vshrl.u32 %v93, 7
    %v95 = vsub.s32 7, %v94
    %v96 = vrot.slane %v59, %v95
    %v97 = vlaneseq
    %v98 = vshrl.u32 %v97, 7
    %v99 = vsub.s32 0, %v98
    %v100 = vrot.slane %v60, %v99
    %v101 = vlaneseq
    %v102 = vshrl.u32 %v101, 7
    %v103 = vsub.s32 1, %v102
    %v104 = vrot.slane %v60, %v103
    %v105 = vlaneseq
    %v106 = vshrl.u32 %v105, 7
    %v107 = vsub.s32 2, %v106
    %v108 = vrot.slane %v60, %v107
    %v109 = vlaneseq
    %v110 = vshrl.u32 %v109, 7
    %v111 = vsub.s32 3, %v110
    %v112 = vrot.slane %v60, %v111
    %v113 = vlaneseq
    %v114 = vshrl.u32 %v113, 7
    %v115 = vsub.s32 4, %v114
    %v116 = vrot.slane %v60, %v115
    %v117 = vlaneseq
    %v118 = vshrl.u32 %v117, 7
    %v119 = vsub.s32 5, %v118
    %v120 = vrot.slane %v60, %v119
    %v121 = vlaneseq
    %v122 = vshrl.u32 %v121, 7
    %v123 = vsub.s32 6, %v122
    %v124 = vrot.slane %v60, %v123
    %v125 = vlaneseq
    %v126 = vshrl.u32 %v125, 7
    %v127 = vsub.s32 7, %v126
    %v128 = vrot.slane %v60, %v127
    %v129 = vlaneseq
    %v130 = vshrl.u32 %v129, 7
    %v131 = vsub.s32 0, %v130
    %v132 = vrot.slane %v61, %v131
    %v133 = vlaneseq
    %v134 = vshrl.u32 %v133, 7
    %v135 = vsub.s32 1, %v134
    %v136 = vrot.slane %v61, %v135
    %v137 = vlaneseq
    %v138 = vshrl.u32 %v137, 7
    %v139 = vsub.s32 2, %v138
    %v140 = vrot.slane %v61, %v139
    %v141 = vlaneseq
    %v142 = vshrl.u32 %v141, 7
    %v143 = vsub.s32 3, %v142
    %v144 = vrot.slane %v61, %v143
    %v165 = vmul.f32 %v39, %v68
    %v166 = vmul.f32 %v40, %v72
    %v167 = vmul.f32 %v41, %v76
    %v168 = vmul.f32 %v42, %v80
    %v169 = vmul.f32 %v43, %v84
    %v170 = vmul.f32 %v44, %v88
    %v171 = vmul.f32 %v45, %v92
    %v172 = vmul.f32 %v46, %v96
    %v173 = vmul.f32 %v47, %v100
    %v174 = vmul.f32 %v48, %v104
    %v175 = vmul.f32 %v49, %v108
    %v176 = vmul.f32 %v50, %v112
    %v177 = vmul.f32 %v51, %v116
    %v178 = vmul.f32 %v52, %v120
    %v179 = vmul.f32 %v53, %v124
    %v180 = vmul.f32 %v54, %v128
    %v181 = vmul.f32 %v55, %v132
    %v182 = vmul.f32 %v56, %v136
    %v183 = vmul.f32 %v57, %v140
    %v184 = vmul.f32 %v58, %v144
    %v185 = vadd.f32 %v165, %v166
    %v186 = vadd.f32 %v185, %v167
    %v187 = vadd.f32 %v186, %v168
    %v188 = vadd.f32 %v187, %v169
    %v189 = vadd.f32 %v188, %v170
    %v190 = vadd.f32 %v189, %v171
    %v191 = vadd.f32 %v190, %v172
    %v192 = vadd.f32 %v191, %v173
    %v193 = vadd.f32 %v192, %v174
    %v194 = vadd.f32 %v193, %v175
    %v195 = vadd.f32 %v194, %v176
    %v196 = vadd.f32 %v195, %v177
    %v197 = vadd.f32 %v196, %v178
    %v198 = vadd.f32 %v197, %v179
    %v199 = vadd.f32 %v198, %v180
    %v200 = vadd.f32 %v199, %v181
    %v201 = vadd.f32 %v200, %v182
    %v202 = vadd.f32 %v201, %v183
    %v203 = vadd.f32 %v202, %v184
    %204 = vadd.xlane.f32.xlu0 %v203
    %v205 = vpop.xlane.xlu0 %204
    %s206 = sld [smem:[#allocation2]]
    %v207 = vstv %s206
    %v208 = vadd.f32 %v205, %v207
    %vm209 = vcmask 7168
    %210 = vst.msk [vmem:[%s3] sm:$0xff] %vm209, %v208
    // Predicated region
    $region22: #{tpu_custom_call.1} parent=1 // pred_check
      _
    $region23: #{tpu_custom_call.1} parent=1 // pred_check_branch
      %212 = sbr.rel (0) target = $region25
    $region24: #{tpu_custom_call.1} parent=1 // pred_region
      _
    $region25: #{tpu_custom_call.1} parent=1 // pred_fallthru
      _
    // Predicated region
    $region26: #{tpu_custom_call.1} parent=1 // pred_check
      _
    $region27: #{tpu_custom_call.1} parent=1 // pred_check_branch
      %214 = sbr.rel (0) target = $region29
    $region28: #{tpu_custom_call.1} parent=1 // pred_region
      _
    $region29: #{tpu_custom_call.1} parent=1 // pred_fallthru
      _
    %215 = vsyncpa [#allocation4], 1
    %216 = vsyncpa [#allocation6], 1

</llo_original>
